<compile_context>
chip_gen: v5e
topology: v5e:2x2
jax: 0.10.0
libtpu: 0.0.40
codegen_flags: <defaults>
</compile_context>

<pallas_src>
import functools
import math

import jax
import jax.numpy as jnp
from jax.experimental import pallas as pl
from jax.experimental.pallas import tpu as pltpu


def _eca_kernel_size(channel, gamma=2, b=1):
    k = int(abs((math.log(channel, 2) + b) / gamma))
    return k if k % 2 else k + 1


def _round_up(v, m):
    return -(-v // m) * m


def _cdiv(a, b):
    return -(-a // b)


def _vmem_limit(nbytes):
    # Stay >= the most restrictive default (16 MiB, v5e) and comfortably below
    # v7x's 64 MiB physical VMEM.
    return int(min(max(int(nbytes), 16 << 20), 48 << 20))


def _conv1d_same(avg, conv_w):
    """Cross-correlation over channels with zero padding (Conv1d(1,1,k,pad=k//2))."""
    c = avg.shape[-1]
    ksize = conv_w.shape[0]
    pad = ksize // 2
    avg_p = jnp.pad(avg, ((0, 0), (pad, pad)))
    out = jnp.zeros_like(avg)
    for j in range(ksize):
        out = out + conv_w[j] * avg_p[:, j:j + c]
    return out


# ---------------------------------------------------------------------------
# Path A: fused single-pass kernel (pool + conv + sigmoid + scale per block).
# ---------------------------------------------------------------------------
def _eca_fused_kernel(taps_ref, x_ref, o_ref, *, channels, c_pad, ksize, pad):
    # taps_ref: (k,) f32 in SMEM (scalar-prefetched), already scaled by 1/(H*W).
    # x_ref / o_ref: (Bt, C, HW) block; HW is the full spatial extent.
    x = x_ref[...]                                       # keep input dtype in vregs
    s = jnp.sum(x, axis=-1, dtype=jnp.float32)           # (Bt, C) pooled sums
    bt = s.shape[0]
    if c_pad > channels:                                  # lane-pad to 128-multiple
        s = jnp.concatenate(
            [s, jnp.zeros((bt, c_pad - channels), jnp.float32)], axis=-1)

    # k-tap cross-correlation over channels (PyTorch Conv1d with zero padding),
    # expressed as masked lane rolls -- no MXU, no (C, C) weight matrix.
    ch = jax.lax.broadcasted_iota(jnp.int32, (bt, c_pad), 1)
    conv = jnp.zeros((bt, c_pad), jnp.float32)
    for j in range(ksize):
        d = j - pad                                       # out[i] += w[j] * avg[i + d]
        shifted = s if d == 0 else pltpu.roll(s, shift=(-d) % c_pad, axis=1)
        valid = jnp.logical_and(ch + d >= 0, ch + d < channels)
        conv = conv + taps_ref[j] * jnp.where(valid, shifted, 0.0)

    attn = jax.nn.sigmoid(conv[:, :channels]).astype(x.dtype)   # (Bt, C)
    o_ref[...] = (x * attn[:, :, None]).astype(o_ref.dtype)


def _eca_single_pass(x_flat, taps, *, bt):
    b, c, hw = x_flat.shape
    ksize = taps.shape[0]
    pad = ksize // 2
    c_pad = _round_up(c, 128)
    kernel = functools.partial(
        _eca_fused_kernel, channels=c, c_pad=c_pad, ksize=ksize, pad=pad)

    hw_lane = _round_up(hw, 128)                           # VMEM lane footprint
    block_bytes = bt * c * hw_lane * x_flat.dtype.itemsize
    limit = _vmem_limit(5 * block_bytes + (2 << 20))       # 2x in + 2x out buffers + slack

    return pl.pallas_call(
        kernel,
        out_shape=jax.ShapeDtypeStruct((b, c, hw), x_flat.dtype),
        grid_spec=pltpu.PrefetchScalarGridSpec(
            num_scalar_prefetch=1,                         # taps -> SMEM
            grid=(b // bt,),
            in_specs=[pl.BlockSpec((bt, c, hw), lambda i, taps_ref: (i, 0, 0))],
            out_specs=pl.BlockSpec((bt, c, hw), lambda i, taps_ref: (i, 0, 0)),
        ),
        compiler_params=pltpu.CompilerParams(
            dimension_semantics=("parallel",),
            vmem_limit_bytes=limit),
    )(taps, x_flat)


# ---------------------------------------------------------------------------
# Path B (large H*W fallback): HW-tiled pooled-sum reduction + HW-tiled scale.
# ---------------------------------------------------------------------------
def _eca_pool_kernel(x_ref, sum_ref, *, hw, t):
    j = pl.program_id(1)

    @pl.when(j == 0)
    def _():
        sum_ref[...] = jnp.zeros_like(sum_ref)

    x = x_ref[...].astype(jnp.float32)                     # (1, C, t)
    lane = jax.lax.broadcasted_iota(jnp.int32, x.shape, 2)
    valid = (j * t + lane) < hw                            # mask ragged tail tile
    sum_ref[...] += jnp.sum(jnp.where(valid, x, 0.0), axis=-1, keepdims=True)


def _eca_scale_kernel(x_ref, attn_ref, o_ref):
    x = x_ref[...]
    o_ref[...] = (x * attn_ref[...].astype(x.dtype)).astype(o_ref.dtype)


def _eca_two_pass(x_flat, conv_w, *, tile_target_bytes=2 << 20):
    b, c, hw = x_flat.shape
    isize = x_flat.dtype.itemsize

    # HW tile: multiple of 128 lanes, ~tile_target_bytes per block.  The final
    # (possibly ragged) tile is masked inside the pool kernel; its out-of-bounds
    # stores in the scale kernel are dropped by Pallas, so no host-side pad.
    t_max = max(128, (tile_target_bytes // max(1, c * isize)) // 128 * 128)
    if hw <= t_max:
        t, n_t = hw, 1
    else:
        t, n_t = t_max, _cdiv(hw, t_max)

    tile_f32 = c * t * 4

    # Pass 1: pooled sums per (batch, channel); HW tiles are the (last) reduction axis.
    sums = pl.pallas_call(
        functools.partial(_eca_pool_kernel, hw=hw, t=t),
        out_shape=jax.ShapeDtypeStruct((b, c, 1), jnp.float32),
        grid_spec=pltpu.PrefetchScalarGridSpec(
            num_scalar_prefetch=0,
            grid=(b, n_t),
            in_specs=[pl.BlockSpec((1, c, t), lambda i, j: (i, 0, j))],
            out_specs=pl.BlockSpec((1, c, 1), lambda i, j: (i, 0, 0)),
        ),
        compiler_params=pltpu.CompilerParams(
            dimension_semantics=("parallel", "arbitrary"),
            vmem_limit_bytes=_vmem_limit(4 * tile_f32 + (2 << 20))),
    )(x_flat)

    # Tiny (b, C) conv + sigmoid in plain JAX (not worth a kernel).
    avg = sums[:, :, 0] * (1.0 / float(hw))                # divide by the TRUE H*W
    attn = jax.nn.sigmoid(_conv1d_same(avg, conv_w))
    attn = attn[:, :, None].astype(jnp.float32)            # (b, C, 1)

    # Pass 2: broadcast scale on a fully parallel (b, HW-tiles) grid.
    return pl.pallas_call(
        _eca_scale_kernel,
        out_shape=jax.ShapeDtypeStruct((b, c, hw), x_flat.dtype),
        grid_spec=pltpu.PrefetchScalarGridSpec(
            num_scalar_prefetch=0,
            grid=(b, n_t),
            in_specs=[pl.BlockSpec((1, c, t), lambda i, j: (i, 0, j)),
                      pl.BlockSpec((1, c, 1), lambda i, j: (i, 0, 0))],
            out_specs=pl.BlockSpec((1, c, t), lambda i, j: (i, 0, j)),
        ),
        compiler_params=pltpu.CompilerParams(
            dimension_semantics=("parallel", "parallel"),
            vmem_limit_bytes=_vmem_limit(6 * tile_f32 + (2 << 20))),
    )(x_flat, attn)


# ---------------------------------------------------------------------------
# Public wrapper
# ---------------------------------------------------------------------------
def eca_module(x, conv_w, *, single_pass_block_bytes=4 << 20, force_two_pass=False):
    """ECA forward. x: (b, c, h, w); conv_w: (k,) Conv1d(1,1,k,bias=False) weight."""
    b, c, h, w = x.shape
    hw = h * w
    x_flat = x.reshape(b, c, hw)
    per_batch_bytes = c * _round_up(hw, 128) * x.dtype.itemsize

    if force_two_pass or per_batch_bytes > single_pass_block_bytes:
        out = _eca_two_pass(x_flat, conv_w.astype(jnp.float32))
    else:
        # Fold the 1/(H*W) of the mean into the taps; the kernel does a plain sum.
        taps = conv_w.astype(jnp.float32) * (1.0 / float(hw))
        bt = 1                                             # batch elements per grid step
        for cand in range(1, b + 1):                       # largest divisor of b that fits
            if b % cand == 0 and cand * per_batch_bytes <= single_pass_block_bytes:
                bt = cand
        out = _eca_single_pass(x_flat, taps, bt=bt)
    return out.reshape(b, c, h, w)


def eca_reference(x, conv_w):
    """Pure-JAX reference mirroring the PyTorch forward."""
    avg = jnp.mean(x.astype(jnp.float32), axis=(2, 3))                     # (b, c)
    attn = jax.nn.sigmoid(_conv1d_same(avg, conv_w.astype(jnp.float32)))   # (b, c)
    return (attn[:, :, None, None] * x.astype(jnp.float32)).astype(x.dtype)


if __name__ == "__main__":
    B, C, H, W = 2, 16, 16, 16
    key = jax.random.PRNGKey(0)
    kx, kw = jax.random.split(key)

    x = jax.random.normal(kx, (B, C, H, W), dtype=jnp.float32)

    # Conv1d(1, 1, k, bias=False) weight, shape (k,).  C=16 -> k=3, padding=1.
    ksize = _eca_kernel_size(C)
    conv_w = (jax.random.uniform(kw, (ksize,), dtype=jnp.float32) - 0.5) * 0.8

    y_ref = eca_reference(x, conv_w)

    # Fused single-pass path (small feature maps).
    y_fused = jax.block_until_ready(eca_module(x, conv_w))
    assert y_fused.shape == (B, C, H, W)
    assert jnp.allclose(y_fused, y_ref, atol=1e-5, rtol=1e-5), "fused path mismatch"

    # Two-pass (pool-reduce + scale) fallback, normally used for large H*W;
    # force it here so both code paths are exercised and validated.
    y_split = jax.block_until_ready(eca_module(x, conv_w, force_two_pass=True))
    assert jnp.allclose(y_split, y_ref, atol=1e-5, rtol=1e-5), "two-pass path mismatch"

    print("KERNEL_OK")
</pallas_src>

<mosaic_0001>
module attributes {stable_mosaic.version = 11 : i64} {
  func.func @_eca_fused_kernel(%arg0: i32, %arg1: memref<3xf32, #tpu.memory_space<smem>>, %arg2: memref<2x16x256xf32, #tpu.memory_space<vmem>>, %arg3: memref<2x16x256xf32, #tpu.memory_space<vmem>>) attributes {dimension_semantics = [#tpu.dimension_semantics<parallel>], iteration_bounds = array<i64: 1>, scalar_prefetch = 1 : i64, scratch_operands = 0 : i64, tpu.core_type = #tpu.core_type<tc>, window_params = [{transform_indices = @transform_0, window_bounds = array<i64: 2, 16, 256>}, {transform_indices = @transform_1, window_bounds = array<i64: 2, 16, 256>}]} {
    %c0 = arith.constant 0 : index
    %c0_0 = arith.constant 0 : index
    %c0_1 = arith.constant 0 : index
    %0 = vector.load %arg2[%c0, %c0_0, %c0_1] : memref<2x16x256xf32, #tpu.memory_space<vmem>>, vector<2x16x256xf32>
    %cst = arith.constant dense<0.000000e+00> : vector<2x16xf32>
    %1 = vector.multi_reduction <add>, %0, %cst [2] : vector<2x16x256xf32> to vector<2x16xf32>
    %cst_2 = arith.constant 0.000000e+00 : f32
    %2 = vector.broadcast %cst_2 : f32 to vector<2x112xf32>
    %3 = tpu.concatenate %1, %2 in 1 : vector<2x16xf32>, vector<2x112xf32> -> vector<2x128xf32>
    %4 = tpu.iota {dimensions = array<i32: 1>} : vector<2x128xi32>
    %cst_3 = arith.constant 0.000000e+00 : f32
    %5 = vector.broadcast %cst_3 : f32 to vector<2x128xf32>
    %c1_i32 = arith.constant 1 : i32
    %6 = tpu.dynamic_rotate %3 by %c1_i32 dim 1 : vector<2x128xf32>, i32 -> vector<2x128xf32>
    %c-1_i32 = arith.constant -1 : i32
    %7 = vector.broadcast %c-1_i32 : i32 to vector<2x128xi32>
    %8 = arith.addi %4, %7 : vector<2x128xi32>
    %c0_i32 = arith.constant 0 : i32
    %9 = vector.broadcast %c0_i32 : i32 to vector<2x128xi32>
    %10 = arith.cmpi sge, %8, %9 : vector<2x128xi32>
    %c-1_i32_4 = arith.constant -1 : i32
    %11 = vector.broadcast %c-1_i32_4 : i32 to vector<2x128xi32>
    %12 = arith.addi %4, %11 : vector<2x128xi32>
    %c16_i32 = arith.constant 16 : i32
    %13 = vector.broadcast %c16_i32 : i32 to vector<2x128xi32>
    %14 = arith.cmpi slt, %12, %13 : vector<2x128xi32>
    %15 = arith.andi %10, %14 : vector<2x128xi1>
    %c0_5 = arith.constant 0 : index
    %16 = memref.load %arg1[%c0_5] : memref<3xf32, #tpu.memory_space<smem>>
    %cst_6 = arith.constant 0.000000e+00 : f32
    %17 = vector.broadcast %cst_6 : f32 to vector<2x128xf32>
    %18 = arith.select %15, %6, %17 : vector<2x128xi1>, vector<2x128xf32>
    %19 = vector.broadcast %16 : f32 to vector<2x128xf32>
    %20 = arith.mulf %19, %18 : vector<2x128xf32>
    %21 = arith.addf %5, %20 : vector<2x128xf32>
    %c0_i32_7 = arith.constant 0 : i32
    %22 = vector.broadcast %c0_i32_7 : i32 to vector<2x128xi32>
    %23 = arith.addi %4, %22 : vector<2x128xi32>
    %c0_i32_8 = arith.constant 0 : i32
    %24 = vector.broadcast %c0_i32_8 : i32 to vector<2x128xi32>
    %25 = arith.cmpi sge, %23, %24 : vector<2x128xi32>
    %c0_i32_9 = arith.constant 0 : i32
    %26 = vector.broadcast %c0_i32_9 : i32 to vector<2x128xi32>
    %27 = arith.addi %4, %26 : vector<2x128xi32>
    %c16_i32_10 = arith.constant 16 : i32
    %28 = vector.broadcast %c16_i32_10 : i32 to vector<2x128xi32>
    %29 = arith.cmpi slt, %27, %28 : vector<2x128xi32>
    %30 = arith.andi %25, %29 : vector<2x128xi1>
    %c1 = arith.constant 1 : index
    %31 = memref.load %arg1[%c1] : memref<3xf32, #tpu.memory_space<smem>>
    %cst_11 = arith.constant 0.000000e+00 : f32
    %32 = vector.broadcast %cst_11 : f32 to vector<2x128xf32>
    %33 = arith.select %30, %3, %32 : vector<2x128xi1>, vector<2x128xf32>
    %34 = vector.broadcast %31 : f32 to vector<2x128xf32>
    %35 = arith.mulf %34, %33 : vector<2x128xf32>
    %36 = arith.addf %21, %35 : vector<2x128xf32>
    %c127_i32 = arith.constant 127 : i32
    %37 = tpu.dynamic_rotate %3 by %c127_i32 dim 1 : vector<2x128xf32>, i32 -> vector<2x128xf32>
    %c1_i32_12 = arith.constant 1 : i32
    %38 = vector.broadcast %c1_i32_12 : i32 to vector<2x128xi32>
    %39 = arith.addi %4, %38 : vector<2x128xi32>
    %c0_i32_13 = arith.constant 0 : i32
    %40 = vector.broadcast %c0_i32_13 : i32 to vector<2x128xi32>
    %41 = arith.cmpi sge, %39, %40 : vector<2x128xi32>
    %c1_i32_14 = arith.constant 1 : i32
    %42 = vector.broadcast %c1_i32_14 : i32 to vector<2x128xi32>
    %43 = arith.addi %4, %42 : vector<2x128xi32>
    %c16_i32_15 = arith.constant 16 : i32
    %44 = vector.broadcast %c16_i32_15 : i32 to vector<2x128xi32>
    %45 = arith.cmpi slt, %43, %44 : vector<2x128xi32>
    %46 = arith.andi %41, %45 : vector<2x128xi1>
    %c2 = arith.constant 2 : index
    %47 = memref.load %arg1[%c2] : memref<3xf32, #tpu.memory_space<smem>>
    %cst_16 = arith.constant 0.000000e+00 : f32
    %48 = vector.broadcast %cst_16 : f32 to vector<2x128xf32>
    %49 = arith.select %46, %37, %48 : vector<2x128xi1>, vector<2x128xf32>
    %50 = vector.broadcast %47 : f32 to vector<2x128xf32>
    %51 = arith.mulf %50, %49 : vector<2x128xf32>
    %52 = arith.addf %36, %51 : vector<2x128xf32>
    %53 = vector.extract_strided_slice %52 {offsets = [0, 0], sizes = [2, 16], strides = [1, 1]} : vector<2x128xf32> to vector<2x16xf32>
    %54 = arith.negf %53 : vector<2x16xf32>
    %55 = math.exp %54 : vector<2x16xf32>
    %cst_17 = arith.constant 1.000000e+00 : f32
    %56 = vector.broadcast %cst_17 : f32 to vector<2x16xf32>
    %57 = arith.addf %56, %55 : vector<2x16xf32>
    %58 = arith.divf %56, %57 : vector<2x16xf32>
    %59 = vector.shape_cast %58 : vector<2x16xf32> to vector<2x16x1xf32>
    %60 = vector.broadcast %59 : vector<2x16x1xf32> to vector<2x16x256xf32>
    %61 = arith.mulf %0, %60 : vector<2x16x256xf32>
    %c0_18 = arith.constant 0 : index
    %c0_19 = arith.constant 0 : index
    %c0_20 = arith.constant 0 : index
    %62 = vector.load %arg3[%c0_18, %c0_19, %c0_20] : memref<2x16x256xf32, #tpu.memory_space<vmem>>, vector<2x16x256xf32>
    tpu.vector_store %arg3[%c0_18, %c0_19, %c0_20], %61 {strides = array<i32>} : memref<2x16x256xf32, #tpu.memory_space<vmem>>, vector<2x16x256xf32>,
    return
  }
  func.func @transform_0(%arg0: i32, %arg1: memref<3xf32, #tpu.memory_space<smem>>) -> (i32, i32, i32) {
    %c0_i32 = arith.constant 0 : i32
    %c0_i32_0 = arith.constant 0 : i32
    %c0_i32_1 = arith.constant 0 : i32
    return %arg0, %c0_i32, %c0_i32_0 : i32, i32, i32
  }
  func.func @transform_1(%arg0: i32, %arg1: memref<3xf32, #tpu.memory_space<smem>>) -> (i32, i32, i32) {
    %c0_i32 = arith.constant 0 : i32
    %c0_i32_0 = arith.constant 0 : i32
    %c0_i32_1 = arith.constant 0 : i32
    return %arg0, %c0_i32, %c0_i32_0 : i32, i32, i32
  }
}

</mosaic_0001>

<llo_original>
// kernel: tpu_custom_call.1
$region0: #{tpu_custom_call.1}
  #allocation0 [shape = 'u32[]', space=smem, size = 0x4, offset = 0x4, fixed_abs, tag = 'smem constant byte address 0x4 - core index']
  #allocation1 [shape = 'u32[72,128]{1,0:T(1,128)}', space=vmem, size = 0x9000, scoped, tag = 'internal scratch']
  #allocation2 [shape = 's32[1]{0}', space=sflag, size = 0x4, scoped, tag = 'scoped memory for tpu_custom_call.1']
  #allocation3 [shape = 'u8[512]{0}', space=smem, size = 0x200, scoped, tag = 'prefetched SMEM operand 0']
  %s0 = inlined_call_operand.hbm [shape: f32[3], index: 0, kind: input, shape index: {}]
  %s1 = inlined_call_operand.hbm [shape: f32[2,16,256], index: 1, kind: input, shape index: {}]
  %s2 = inlined_call_operand.hbm [shape: f32[2,16,256], index: 2, kind: output, shape index: {}]
  %s3 = sld [smem:[#allocation0]]
  $region18: #{tpu_custom_call.1} parent=0
    _
  %s5 = ssub.s32 1, %s3
  %s6 = scalar_select 0, %s5, %s3
  %s8 = sshll.u32 %s0, 4
  %s9 = int_to_ptr.hbm [resolvable:$true] %s8
  %11 = dma.hbm_to_smem %s9, 16, [#allocation3], [#allocation2]
  %13 = dma.done [#allocation2], 16
  %14 = sfence
  $region1: #{tpu_custom_call.1} parent=0
    #allocation4 [shape = 'u8[32768]{0}', space=vmem, size = 0x8000, scoped, tag = 'input window, operand 1, single buffered']
    #allocation5 [shape = 's32[1]{0}', space=sflag, size = 0x4, scoped, tag = 'scoped memory for tpu_custom_call.1']
    #allocation6 [shape = 's32[1]{0}', space=sflag, size = 0x4, scoped, tag = 'scoped memory for tpu_custom_call.1']
    #allocation7 [shape = 'u8[32768]{0}', space=vmem, size = 0x8000, scoped, tag = 'output window, operand 0, single buffered']
    %15 = vsyncpa [#allocation5], 0
    %16 = vsyncpa [#allocation6], 0
    // Predicated region
    $region2: #{tpu_custom_call.1} parent=1 // pred_check
      _
    $region3: #{tpu_custom_call.1} parent=1 // pred_check_branch
      %18 = sbr.rel (0) target = $region5
    $region4: #{tpu_custom_call.1} parent=1 // pred_region
      %20 = vsyncadd [#allocation5], 0
      %s21 = sshll.u32 %s1, 4
      %s22 = int_to_ptr.hbm [resolvable:$true] %s21
      %s23 = sshll.u32 [#allocation4], 4
      %s24 = int_to_ptr.vmem [resolvable:$true] %s23
      %29 = dma.hbm_to_vmem [thread:$0]  %s22, 1024, %s24, [#allocation5], 256, 256, 16
    $region5: #{tpu_custom_call.1} parent=1 // pred_fallthru
      _
    // Predicated region
    $region6: #{tpu_custom_call.1} parent=1 // pred_check
      _
    $region7: #{tpu_custom_call.1} parent=1 // pred_check_branch
      %31 = sbr.rel (0) target = $region9
    $region8: #{tpu_custom_call.1} parent=1 // pred_region
      %33 = dma.done [#allocation5], 1024
    $region9: #{tpu_custom_call.1} parent=1 // pred_fallthru
      _
    %v34 = vld [vmem:[#allocation4] sm:$0xff]
    %v35 = vld [vmem:[#allocation4 + $0x8] sm:$0xff]
    %v36 = vld [vmem:[#allocation4 + $0x10] sm:$0xff]
    %v37 = vld [vmem:[#allocation4 + $0x18] sm:$0xff]
    %v38 = vld [vmem:[#allocation4 + $0x20] sm:$0xff]
    %v39 = vld [vmem:[#allocation4 + $0x28] sm:$0xff]
    %v40 = vld [vmem:[#allocation4 + $0x30] sm:$0xff]
    %v41 = vld [vmem:[#allocation4 + $0x38] sm:$0xff]
    %v42 = vadd.f32 %v34, %v35
    %43 = vadd.xlane.f32.xlu0 %v42
    %v44 = vpop.xlane.xlu0 %43
    %v45 = vadd.f32 %v36, %v37
    %46 = vadd.xlane.f32.xlu0 %v45
    %v47 = vpop.xlane.xlu0 %46
    %v48 = vadd.f32 %v38, %v39
    %49 = vadd.xlane.f32.xlu0 %v48
    %v50 = vpop.xlane.xlu0 %49
    %v51 = vadd.f32 %v40, %v41
    %52 = vadd.xlane.f32.xlu0 %v51
    %v53 = vpop.xlane.xlu0 %52
    %v58 = vlaneseq
    %v59 = vand.u32 %v58, 127
    %v60 = vperm.slane %v44, %v59
    %v61 = vadd.s32 %v59, 4294967288
    %v62 = vperm.slane %v47, %v61
    %vm63 = vcmask 130112
    %v64 = vsel %vm63, %v62, %v60
    %v65 = vperm.slane %v50, %v59
    %v66 = vperm.slane %v53, %v61
    %v67 = vsel %vm63, %v66, %v65
    %vm68 = vcmask 1041409
    %v69 = vsel %vm68, %v67, %v64
    %vm71 = vcmask 130048
    %v72 = vsel %vm71, %v69, 0.0
    %73 = vrot.lane.b32.xlu0 %v72, 1
    %v74 = vpop.permute.xlu0 %73
    %v75 = vadd.s32 %v59, 4294967295
    %vm76 = vcmp.ge.s32.totalorder %v75, 0
    %vm77 = vcmp.lt.s32.totalorder %v75, 16
    %vm78 = vmand %vm76, %vm77
    %s79 = sld [smem:[#allocation3]]
    %v80 = vsel %vm78, %v74, 0.0
    %v81 = vstv %s79
    %v82 = vmul.f32 %v81, %v80
    %v83 = vadd.f32 %v82, 0.0
    %vm84 = vcmp.ge.s32.totalorder %v59, 0
    %vm85 = vcmp.lt.s32.totalorder %v59, 16
    %vm86 = vmand %vm84, %vm85
    %s87 = sld [smem:[#allocation3 + $0x1]]
    %v88 = vsel %vm86, %v72, 0.0
    %v89 = vstv %s87
    %v90 = vmul.f32 %v89, %v88
    %v91 = vadd.f32 %v83, %v90
    %92 = vrot.lane.b32.xlu0 %v72, 127
    %v93 = vpop.permute.xlu0 %92
    %v94 = vadd.s32 %v59, 1
    %vm95 = vcmp.ge.s32.totalorder %v94, 0
    %vm96 = vcmp.lt.s32.totalorder %v94, 16
    %vm97 = vmand %vm95, %vm96
    %s98 = sld [smem:[#allocation3 + $0x2]]
    %v99 = vsel %vm97, %v93, 0.0
    %v100 = vstv %s98
    %v101 = vmul.f32 %v100, %v99
    %v102 = vadd.f32 %v91, %v101
    %v103 = vxor.u32 %v102, 2147483648
    %v104 = vmul.f32 %v103, 1.442695
    %v105 = vpow.pop %v104
    %v106 = vadd.f32 %v105, 1.0
    %v107 = vrcp.pop %v106
    %v108 = vmul.f32 %v106, %v107
    %v109 = vsub.f32 1.0, %v108
    %v110 = vmul.f32 %v107, %v109
    %v111 = vadd.f32 %v107, %v110
    %vm112 = vweird.f32 %v106
    %vm113 = vweird.f32 %v107
    %vm114 = vmor %vm112, %vm113
    %v115 = vsel %vm114, %v107, %v111
    %v116 = vand.u32 2147483647, %v106
    %vm117 = vcmp.eq.f32.partialorder %v116, 8.507059e+37
    %v118 = vand.u32 %v106, 2147483648
    %v119 = vor.u32 1.1754944e-38, %v118
    %v120 = vsel %vm117, %v119, %v115
    %v121 = vmul.f32 1.0, %v120
    %v122 = vperm.slane %v121, 0
    %v123 = vlaneseq
    %v124 = vshrl.u32 %v123, 7
    %126 = vset.pattern.permute.xlu0 %v124
    %127 = vperm.xlu0 %126, %v122
    %v128 = vpop.permute.xlu0 %127
    %v129 = vlaneseq
    %v130 = vshrl.u32 %v129, 7
    %v131 = vadd.s32 %v130, 8
    %132 = vset.pattern.permute.xlu0 %v131
    %133 = vperm.xlu0 %132, %v122
    %v134 = vpop.permute.xlu0 %133
    %v135 = vperm.slane %v121, 1
    %v136 = vlaneseq
    %v137 = vshrl.u32 %v136, 7
    %139 = vset.pattern.permute.xlu0 %v137
    %140 = vperm.xlu0 %139, %v135
    %v141 = vpop.permute.xlu0 %140
    %v142 = vlaneseq
    %v143 = vshrl.u32 %v142, 7
    %v144 = vadd.s32 %v143, 8
    %145 = vset.pattern.permute.xlu0 %v144
    %146 = vperm.xlu0 %145, %v135
    %v147 = vpop.permute.xlu0 %146
    %v148 = vmul.f32 %v34, %v128
    %v149 = vmul.f32 %v35, %v128
    %v150 = vmul.f32 %v36, %v134
    %v151 = vmul.f32 %v37, %v134
    %v152 = vmul.f32 %v38, %v141
    %v153 = vmul.f32 %v39, %v141
    %v154 = vmul.f32 %v40, %v147
    %v155 = vmul.f32 %v41, %v147
    %156 = vst [vmem:[#allocation7] sm:$0xff] %v148
    %157 = vst [vmem:[#allocation7 + $0x8] sm:$0xff] %v149
    %158 = vst [vmem:[#allocation7 + $0x10] sm:$0xff] %v150
    %159 = vst [vmem:[#allocation7 + $0x18] sm:$0xff] %v151
    %160 = vst [vmem:[#allocation7 + $0x20] sm:$0xff] %v152
    %161 = vst [vmem:[#allocation7 + $0x28] sm:$0xff] %v153
    %162 = vst [vmem:[#allocation7 + $0x30] sm:$0xff] %v154
    %163 = vst [vmem:[#allocation7 + $0x38] sm:$0xff] %v155
    // Predicated region
    $region10: #{tpu_custom_call.1} parent=1 // pred_check
      _
    $region11: #{tpu_custom_call.1} parent=1 // pred_check_branch
      %165 = sbr.rel (0) target = $region13
    $region12: #{tpu_custom_call.1} parent=1 // pred_region
      %167 = vsyncadd [#allocation6], 0
      %s168 = sshll.u32 [#allocation7], 4
      %s169 = int_to_ptr.vmem [resolvable:$true] %s168
      %s170 = sshll.u32 %s2, 4
      %s171 = int_to_ptr.hbm [resolvable:$true] %s170
      %176 = dma.vmem_to_hbm [thread:$0]  %s169, 1024, %s171, [#allocation6], 256, 256, 16
    $region13: #{tpu_custom_call.1} parent=1 // pred_fallthru
      _
    // Predicated region
    $region14: #{tpu_custom_call.1} parent=1 // pred_check
      _
    $region15: #{tpu_custom_call.1} parent=1 // pred_check_branch
      %178 = sbr.rel (0) target = $region17
    $region16: #{tpu_custom_call.1} parent=1 // pred_region
      %180 = dma.done [#allocation6], 1024
    $region17: #{tpu_custom_call.1} parent=1 // pred_fallthru
      _
    %181 = vsyncpa [#allocation5], 1
    %182 = vsyncpa [#allocation6], 1

</llo_original>
